<compile_context>
chip_gen: v7x
topology: tpu7x:2x2x1
jax: 0.10.0
libtpu: 0.0.40
codegen_flags: <defaults>
</compile_context>

<pallas_src>
import functools

import numpy as np
import jax
import jax.numpy as jnp
from jax.experimental import pallas as pl
from jax.experimental.pallas import tpu as pltpu


# ----------------------------------------------------------------------------
# Kernel 1: node merge  node_embs = SEL @ relu(X)   (fused ReLU, f32 MXU)
#   SEL[n, i] = 1/count_n for every instance row i owned by node n, else 0.
#   grid = (node_tiles,), full instance table resident per step.
# ----------------------------------------------------------------------------
def _merge_kernel(sel_ref, x_ref, out_ref):
    out_ref[...] = jnp.dot(sel_ref[...], jnp.maximum(x_ref[...], 0.0),
                           preferred_element_type=jnp.float32)


def merge_node_representations(instance_embs, sel, tile_nodes):
    num_nodes, n_inst = sel.shape
    d = instance_embs.shape[1]
    n_pad = pl.cdiv(num_nodes, tile_nodes) * tile_nodes
    sel_p = jnp.pad(sel, ((0, n_pad - num_nodes), (0, 0)))
    out = pl.pallas_call(
        _merge_kernel,
        out_shape=jax.ShapeDtypeStruct((n_pad, d), jnp.float32),
        grid=(n_pad // tile_nodes,),
        in_specs=[pl.BlockSpec((tile_nodes, n_inst), lambda i: (i, 0)),
                  pl.BlockSpec((n_inst, d), lambda i: (0, 0))],
        out_specs=pl.BlockSpec((tile_nodes, d), lambda i: (i, 0)),
        compiler_params=pltpu.CompilerParams(
            dimension_semantics=("parallel",)),
    )(sel_p, instance_embs)
    return out[:num_nodes]


# ----------------------------------------------------------------------------
# Kernel 2a: hoisted wide message matmul  msgs = H @ [W_0|...|W_{R-1}|W_loop]
#   bf16 operands (pre-cast in wrapper), f32 accumulate, bf16 output stream.
# ----------------------------------------------------------------------------
def _messages_kernel(h_ref, w_ref, out_ref):
    out_ref[...] = jnp.dot(h_ref[...], w_ref[...],
                           preferred_element_type=jnp.float32
                           ).astype(out_ref.dtype)


def compute_messages(h_bf16, w_flat_bf16, tile_n):
    n_rows, d_in = h_bf16.shape          # n_rows already padded to tile_n
    w_width = w_flat_bf16.shape[1]
    return pl.pallas_call(
        _messages_kernel,
        out_shape=jax.ShapeDtypeStruct((n_rows, w_width), jnp.bfloat16),
        grid=(n_rows // tile_n,),
        in_specs=[pl.BlockSpec((tile_n, d_in), lambda i: (i, 0)),
                  pl.BlockSpec((d_in, w_width), lambda i: (0, 0))],
        out_specs=pl.BlockSpec((tile_n, w_width), lambda i: (i, 0)),
        compiler_params=pltpu.CompilerParams(
            dimension_semantics=("parallel",)),
    )(h_bf16, w_flat_bf16)


# ----------------------------------------------------------------------------
# Kernel 2b: RGCN aggregation as one tiled matmul over a collapsed K axis
#   out[dst] = A2[dst, :] @ msgs2 + loop_msg[dst] + bias  (+ ReLU on layer 0)
#   grid = (dst_tiles [parallel], k_tiles [arbitrary]); out tile VMEM-resident.
# ----------------------------------------------------------------------------
def _aggregate_kernel(a_ref, m_ref, loop_ref, bias_ref, out_ref, *,
                      apply_relu):
    k = pl.program_id(1)

    @pl.when(k == 0)
    def _():
        out_ref[...] = loop_ref[...].astype(jnp.float32) + bias_ref[...]

    out_ref[...] += jnp.dot(a_ref[...], m_ref[...],
                            preferred_element_type=jnp.float32)

    if apply_relu:
        @pl.when(k == pl.num_programs(1) - 1)
        def _():
            out_ref[...] = jnp.maximum(out_ref[...], 0.0)


def rgcn_aggregate(adj2_bf16, rel_msgs, loop_msgs, bias, d_out, apply_relu,
                   n_pad, k_pad, tile_dst, tile_k):
    bias2d = bias.reshape(1, d_out)
    return pl.pallas_call(
        functools.partial(_aggregate_kernel, apply_relu=apply_relu),
        out_shape=jax.ShapeDtypeStruct((n_pad, d_out), jnp.float32),
        grid=(n_pad // tile_dst, k_pad // tile_k),
        in_specs=[
            pl.BlockSpec((tile_dst, tile_k), lambda d, k: (d, k)),   # A2 tile
            pl.BlockSpec((tile_k, d_out), lambda d, k: (k, 0)),      # msgs2
            pl.BlockSpec((tile_dst, d_out), lambda d, k: (d, 0)),    # loop msg
            pl.BlockSpec((1, d_out), lambda d, k: (0, 0)),           # bias
        ],
        out_specs=pl.BlockSpec((tile_dst, d_out), lambda d, k: (d, 0)),
        compiler_params=pltpu.CompilerParams(
            dimension_semantics=("parallel", "arbitrary")),
    )(adj2_bf16, rel_msgs, loop_msgs, bias2d)


def prepare_adjacency(adj, n_pad, k_pad):
    """adj (R, N, N) f32 -> A2 (n_pad, k_pad) bf16 with A2[d, r*n_pad+s]=adj[r,d,s]."""
    num_rels, n_dst, n_src = adj.shape
    a = jnp.pad(adj, ((0, 0), (0, n_pad - n_dst), (0, n_pad - n_src)))
    a2 = jnp.transpose(a, (1, 0, 2)).reshape(n_pad, num_rels * n_pad)
    a2 = jnp.pad(a2, ((0, 0), (0, k_pad - num_rels * n_pad)))
    return a2.astype(jnp.bfloat16)


def rgcn_layer(adj2_bf16, h, w, w_loop, bias, apply_relu,
               num_nodes, n_pad, k_pad, tile_n, tile_k):
    num_rels, d_in, d_out = w.shape
    # Wide RHS [W_0 | ... | W_{R-1} | W_loop] (XLA glue, built once per layer).
    w_all = jnp.concatenate([w, w_loop[None]], axis=0)
    w_flat = jnp.transpose(w_all, (1, 0, 2)).reshape(
        d_in, (num_rels + 1) * d_out).astype(jnp.bfloat16)
    h_bf = jnp.pad(h, ((0, n_pad - num_nodes), (0, 0))).astype(jnp.bfloat16)
    msgs = compute_messages(h_bf, w_flat, tile_n)       # (n_pad, (R+1)*d_out)
    # Permute relation messages to the collapsed K layout (tiny XLA op).
    rel_msgs = msgs[:, :num_rels * d_out].reshape(n_pad, num_rels, d_out)
    rel_msgs = jnp.transpose(rel_msgs, (1, 0, 2)).reshape(
        num_rels * n_pad, d_out)
    rel_msgs = jnp.pad(rel_msgs, ((0, k_pad - num_rels * n_pad), (0, 0)))
    loop_msgs = msgs[:, num_rels * d_out:]
    out = rgcn_aggregate(adj2_bf16, rel_msgs, loop_msgs, bias, d_out,
                         apply_relu, n_pad, k_pad, tile_n, tile_k)
    return out[:num_nodes]


# ----------------------------------------------------------------------------
# Kernel 3: bilinear link scoring, relation-grouped edge tiles
#   grid = (edge_tiles,), per-tile relation id scalar-prefetched -> exactly one
#   d x d MXU matmul per tile; lane-dense (tiles, 1, tile_e) output slab.
# ----------------------------------------------------------------------------
def _score_kernel(tile_rel_ref, s_ref, o_ref, w_ref, out_ref):
    del tile_rel_ref                                     # only used by index_maps
    tmp = jnp.dot(s_ref[...], w_ref[...],
                  preferred_element_type=jnp.float32)    # [TE, D] f32
    contrib = jnp.sum(tmp * o_ref[...].astype(jnp.float32), axis=1)   # [TE]
    out_ref[...] = contrib[None, None, :]


def _group_edges_by_relation(rel_np, num_out_rels, tile_e):
    slot_edge, tile_rel = [], []
    for r in range(num_out_rels):
        idxs = np.nonzero(rel_np == r)[0].astype(np.int32)
        if idxs.size == 0:
            continue
        n_tiles_r = -(-idxs.size // tile_e)
        pad = n_tiles_r * tile_e - idxs.size
        slot_edge.append(np.concatenate([idxs, np.full(pad, -1, np.int32)]))
        tile_rel.extend([r] * n_tiles_r)
    slot_edge = np.concatenate(slot_edge)
    tile_rel = np.asarray(tile_rel, np.int32)
    pos_of_edge = np.zeros(rel_np.shape[0], np.int32)
    valid = slot_edge >= 0
    pos_of_edge[slot_edge[valid]] = np.nonzero(valid)[0].astype(np.int32)
    return slot_edge, tile_rel, pos_of_edge


def calc_score(h, w_relation, src, rel, obj, tile_e):
    d = h.shape[1]
    num_out_rels = w_relation.shape[0]
    # Host-side relation grouping (edge lists are concrete metadata here).
    src_np, rel_np, obj_np = np.asarray(src), np.asarray(rel), np.asarray(obj)
    slot_edge, tile_rel, pos_of_edge = _group_edges_by_relation(
        rel_np, num_out_rels, tile_e)
    n_tiles = int(tile_rel.shape[0])
    safe = np.where(slot_edge >= 0, slot_edge, 0)
    h_bf = h.astype(jnp.bfloat16)                         # pre-cast the stream
    s = h_bf[jnp.asarray(src_np[safe])]                   # (n_tiles*tile_e, d)
    o = h_bf[jnp.asarray(obj_np[safe])]
    w_bf = w_relation.astype(jnp.bfloat16)
    out = pl.pallas_call(
        _score_kernel,
        out_shape=jax.ShapeDtypeStruct((n_tiles, 1, tile_e), jnp.float32),
        grid_spec=pltpu.PrefetchScalarGridSpec(
            num_scalar_prefetch=1,
            grid=(n_tiles,),
            in_specs=[
                pl.BlockSpec((tile_e, d), lambda t, tr: (t, 0)),
                pl.BlockSpec((tile_e, d), lambda t, tr: (t, 0)),
                pl.BlockSpec((pl.Squeezed(), d, d),
                             lambda t, tr: (tr[t], 0, 0)),    # one W_r / tile
            ],
            out_specs=pl.BlockSpec((1, 1, tile_e), lambda t, tr: (t, 0, 0)),
        ),
        compiler_params=pltpu.CompilerParams(
            dimension_semantics=("parallel",)),
    )(jnp.asarray(tile_rel), s, o, w_bf)
    flat = out.reshape(n_tiles * tile_e)
    return flat[jnp.asarray(pos_of_edge)]                 # back to input order


# ----------------------------------------------------------------------------
# Full forward (plain-JAX glue: weight concat, adjacency reshape, pads)
# ----------------------------------------------------------------------------
def rgcn_link_predict_forward(instance_embs, sel, adj, params, target_edges,
                              *, tile_n=128, tile_k=256, tile_e=128):
    # dropout1 / per-layer dropout are identity (eval mode)
    num_nodes = sel.shape[0]
    num_rels = params["w0"].shape[0]
    node_embs = merge_node_representations(instance_embs, sel, tile_n)

    n_pad = pl.cdiv(num_nodes, tile_n) * tile_n
    k_pad = pl.cdiv(num_rels * n_pad, tile_k) * tile_k
    adj2_bf16 = prepare_adjacency(adj, n_pad, k_pad)       # reused by both layers

    h = rgcn_layer(adj2_bf16, node_embs, params["w0"], params["loop0"],
                   params["b0"], True, num_nodes, n_pad, k_pad,
                   tile_n, tile_k)                          # layer 0 (ReLU)
    h = rgcn_layer(adj2_bf16, h, params["w1"], params["loop1"],
                   params["b1"], False, num_nodes, n_pad, k_pad,
                   tile_n, tile_k)                          # layer 1 (no act.)

    src, rel, obj, labels = target_edges
    score = calc_score(h, params["w_relation"], src, rel, obj, tile_e)
    y_pred = jax.nn.sigmoid(score)                          # predict() mode
    return y_pred, labels, h, node_embs


# ----------------------------------------------------------------------------
# Pure-JAX reference (same bf16-operand / f32-accumulate numerics)
# ----------------------------------------------------------------------------
def _reference_layer(adj_bf16, h, w, w_loop, bias, apply_relu):
    hb = h.astype(jnp.bfloat16)
    msgs = jnp.einsum("ni,rio->rno", hb, w.astype(jnp.bfloat16),
                      preferred_element_type=jnp.float32).astype(jnp.bfloat16)
    loop = jnp.einsum("ni,io->no", hb, w_loop.astype(jnp.bfloat16),
                      preferred_element_type=jnp.float32).astype(jnp.bfloat16)
    out = jnp.einsum("rds,rso->do", adj_bf16, msgs,
                     preferred_element_type=jnp.float32)
    out = out + loop.astype(jnp.float32) + bias[None, :]
    return jnp.maximum(out, 0.0) if apply_relu else out


def reference_forward(instance_embs, idx_mat, w_mat, adj, params,
                      target_edges):
    relu_x = jnp.maximum(instance_embs, 0.0)
    node_embs = jnp.sum(relu_x[idx_mat] * w_mat[:, :, None], axis=1)

    adj_bf16 = adj.astype(jnp.bfloat16)
    h = _reference_layer(adj_bf16, node_embs, params["w0"], params["loop0"],
                         params["b0"], True)
    h = _reference_layer(adj_bf16, h, params["w1"], params["loop1"],
                         params["b1"], False)

    src, rel, obj, labels = target_edges
    s = h[src].astype(jnp.bfloat16)
    o = h[obj].astype(jnp.bfloat16)
    w_r = params["w_relation"][rel].astype(jnp.bfloat16)
    tmp = jnp.einsum("ed,edk->ek", s, w_r,
                     preferred_element_type=jnp.float32)
    score = jnp.sum(tmp * o.astype(jnp.float32), axis=1)
    return jax.nn.sigmoid(score), labels, h, node_embs


# ----------------------------------------------------------------------------
if __name__ == "__main__":
    IN_DIM = 128          # BERT L-2 H-128 hidden size -> in_dim
    H_DIM = 128           # h_dim
    N_NODES = 256         # graph nodes
    TILE_N = 128          # >=2 dst tiles so both v7x TensorCores get work
    TILE_K = 256
    N_INSTANCES = 512     # BERT instance embeddings
    MAX_ROWS = 4          # nid2rows width
    NUM_NARR_RELS = 3
    NUM_OUT_RELS = 4
    N_EDGES = 200         # not a multiple of 128 -> exercises padding
    TILE_E = 128

    key = jax.random.PRNGKey(0)
    ks = jax.random.split(key, 8)

    # Synthetic BERT instance embeddings (output of BERTNarrativeGraph gather)
    instance_embs = jax.random.normal(ks[0], (N_INSTANCES, IN_DIM),
                                      jnp.float32)

    # nid2rows: node n owns rows [2n, 2n+1] (+ one extra for n % 3 == 0)
    nid2rows = np.full((N_NODES, MAX_ROWS), -1, dtype=np.int32)
    for n in range(N_NODES):
        nid2rows[n, 0] = 2 * n
        nid2rows[n, 1] = 2 * n + 1
        if n % 3 == 0:
            nid2rows[n, 2] = (3 * n + 1) % N_INSTANCES
    valid = nid2rows >= 0
    counts = valid.sum(axis=1).astype(np.int32)
    idx_np = np.where(valid, nid2rows, 0).astype(np.int32)
    w_np = np.where(valid, 1.0 / np.maximum(counts, 1)[:, None],
                    0.0).astype(np.float32)
    idx_mat = jnp.asarray(idx_np)
    w_mat = jnp.asarray(w_np)

    # Dense selection / mean-weight matrix SEL[n, row] = 1/count_n
    sel_np = np.zeros((N_NODES, N_INSTANCES), np.float32)
    for n in range(N_NODES):
        for m in range(MAX_ROWS):
            if valid[n, m]:
                sel_np[n, nid2rows[n, m]] += 1.0 / counts[n]
    sel = jnp.asarray(sel_np)

    # Dense per-relation adjacency with per-edge norm = 1 / in_degree
    adj_np = np.zeros((NUM_NARR_RELS, N_NODES, N_NODES), np.float32)
    for r in range(NUM_NARR_RELS):
        for n in range(N_NODES):
            src_n = n
            dst_n = (n * (r + 2) + r + 1) % N_NODES
            adj_np[r, dst_n, src_n] += 1.0
    in_deg = adj_np.sum(axis=(0, 2))
    adj_np = adj_np / np.maximum(in_deg[None, :, None], 1.0)
    adj = jnp.asarray(adj_np)

    def xavier(k, shape, fan_in, fan_out):
        bound = np.sqrt(2.0) * np.sqrt(6.0 / (fan_in + fan_out))
        return jax.random.uniform(k, shape, jnp.float32, -bound, bound)

    params = {
        "w0": xavier(ks[1], (NUM_NARR_RELS, IN_DIM, H_DIM), IN_DIM, H_DIM),
        "loop0": xavier(ks[2], (IN_DIM, H_DIM), IN_DIM, H_DIM),
        "b0": jnp.zeros((H_DIM,), jnp.float32),
        "w1": xavier(ks[3], (NUM_NARR_RELS, H_DIM, H_DIM), H_DIM, H_DIM),
        "loop1": xavier(ks[4], (H_DIM, H_DIM), H_DIM, H_DIM),
        "b1": jnp.zeros((H_DIM,), jnp.float32),
        "w_relation": xavier(ks[5], (NUM_OUT_RELS, H_DIM, H_DIM),
                             H_DIM, H_DIM),
    }

    # target_edges: (src ids, rel ids, obj ids, labels)
    src_ids = (jnp.arange(N_EDGES, dtype=jnp.int32) * 7) % N_NODES
    rel_ids = jnp.arange(N_EDGES, dtype=jnp.int32) % NUM_OUT_RELS
    obj_ids = (jnp.arange(N_EDGES, dtype=jnp.int32) * 13 + 5) % N_NODES
    labels = jnp.asarray((np.arange(N_EDGES) % 2).astype(np.float32))
    target_edges = (src_ids, rel_ids, obj_ids, labels)

    y_pred, y, embs, node_embs = rgcn_link_predict_forward(
        instance_embs, sel, adj, params, target_edges,
        tile_n=TILE_N, tile_k=TILE_K, tile_e=TILE_E)
    jax.block_until_ready((y_pred, y, embs, node_embs))

    y_ref, _, embs_ref, node_ref = reference_forward(
        instance_embs, idx_mat, w_mat, adj, params, target_edges)

    np.testing.assert_allclose(np.asarray(node_embs), np.asarray(node_ref),
                               rtol=1e-3, atol=1e-3)
    np.testing.assert_allclose(np.asarray(embs), np.asarray(embs_ref),
                               rtol=2e-2, atol=2e-2)
    np.testing.assert_allclose(np.asarray(y_pred), np.asarray(y_ref),
                               rtol=5e-2, atol=5e-2)
    print("KERNEL_OK")
</pallas_src>

<mosaic_0001>
module attributes {stable_mosaic.version = 11 : i64} {
  func.func @_merge_kernel(%arg0: i32, %arg1: memref<128x512xf32, #tpu.memory_space<vmem>>, %arg2: memref<512x128xf32, #tpu.memory_space<vmem>>, %arg3: memref<128x128xf32, #tpu.memory_space<vmem>>) attributes {dimension_semantics = [#tpu.dimension_semantics<parallel>], iteration_bounds = array<i64: 2>, scalar_prefetch = 0 : i64, scratch_operands = 0 : i64, tpu.core_type = #tpu.core_type<tc>, window_params = [{transform_indices = @transform_0, window_bounds = array<i64: 128, 512>}, {pipeline_mode = #tpu.pipeline_mode<synchronous>, transform_indices = @transform_1, window_bounds = array<i64: 512, 128>}, {transform_indices = @transform_2, window_bounds = array<i64: 128, 128>}]} {
    %c0 = arith.constant 0 : index
    %c0_0 = arith.constant 0 : index
    %0 = vector.load %arg1[%c0, %c0_0] : memref<128x512xf32, #tpu.memory_space<vmem>>, vector<128x512xf32>
    %c0_1 = arith.constant 0 : index
    %c0_2 = arith.constant 0 : index
    %1 = vector.load %arg2[%c0_1, %c0_2] : memref<512x128xf32, #tpu.memory_space<vmem>>, vector<512x128xf32>
    %cst = arith.constant 0.000000e+00 : f32
    %2 = vector.broadcast %cst : f32 to vector<512x128xf32>
    %3 = arith.maximumf %1, %2 : vector<512x128xf32>
    %cst_3 = arith.constant dense<0.000000e+00> : vector<128x128xf32>
    %4 = tpu.matmul %0, %3, %cst_3 {dimension_numbers = #tpu.dot_dimension_numbers<[1], [0], [0], [1], [0, 0, 1, 1], [], []>} : vector<128x512xf32>, vector<512x128xf32>, vector<128x128xf32> -> vector<128x128xf32>
    %c0_4 = arith.constant 0 : index
    %c0_5 = arith.constant 0 : index
    %5 = vector.load %arg3[%c0_4, %c0_5] : memref<128x128xf32, #tpu.memory_space<vmem>>, vector<128x128xf32>
    tpu.vector_store %arg3[%c0_4, %c0_5], %4 {strides = array<i32>} : memref<128x128xf32, #tpu.memory_space<vmem>>, vector<128x128xf32>,
    return
  }
  func.func @transform_0(%arg0: i32) -> (i32, i32) {
    %c0_i32 = arith.constant 0 : i32
    %c0_i32_0 = arith.constant 0 : i32
    return %arg0, %c0_i32 : i32, i32
  }
  func.func @transform_1(%arg0: i32) -> (i32, i32) {
    %c0_i32 = arith.constant 0 : i32
    %c0_i32_0 = arith.constant 0 : i32
    %c0_i32_1 = arith.constant 0 : i32
    return %c0_i32, %c0_i32_0 : i32, i32
  }
  func.func @transform_2(%arg0: i32) -> (i32, i32) {
    %c0_i32 = arith.constant 0 : i32
    %c0_i32_0 = arith.constant 0 : i32
    return %arg0, %c0_i32 : i32, i32
  }
}

</mosaic_0001>

<llo_original>
// kernel: tpu_custom_call.1
$region0: #{tpu_custom_call.1}
  #allocation0 [shape = 'u32[]', space=smem, size = 0x4, offset = 0x4, fixed_abs, tag = 'smem constant byte address 0x4 - core index']
  #allocation1 [shape = 'u32[144,128]{1,0:T(1,128)}', space=vmem, size = 0x12000, scoped, tag = 'internal scratch']
  %s0 = inlined_call_operand.hbm [shape: f32[256,512], index: 0, kind: input, shape index: {}]
  %s1 = inlined_call_operand.hbm [shape: f32[512,128], index: 1, kind: input, shape index: {}]
  %s2 = inlined_call_operand.hbm [shape: f32[256,128], index: 2, kind: output, shape index: {}]
  %s3 = sld [smem:[#allocation0]]
  $region49: #{tpu_custom_call.1} parent=0
    _
  %s5 = ssub.s32 1, %s3
  %s6 = scalar_select 0, %s5, %s3
  $region1: #{tpu_custom_call.1} parent=0
    #allocation2 [shape = 'u8[524288]{0}', space=vmem, size = 0x80000, scoped, tag = 'input window, operand 0']
    #allocation3 [shape = 's32[2]{0}', space=sflag, size = 0x8, scoped, tag = 'scoped memory for tpu_custom_call.1']
    #allocation4 [shape = 's32[2]{0}', space=sflag, size = 0x8, scoped, tag = 'scoped memory for tpu_custom_call.1']
    #allocation5 [shape = 'u8[262144]{0}', space=vmem, size = 0x40000, scoped, tag = 'input window, operand 1, single buffered']
    #allocation6 [shape = 's32[1]{0}', space=sflag, size = 0x4, scoped, tag = 'scoped memory for tpu_custom_call.1']
    #allocation7 [shape = 'u8[131072]{0}', space=vmem, size = 0x20000, scoped, tag = 'output window, operand 0']
    %7 = vsyncpa [#allocation3], 0
    %s8 = scalar_lea.sflag [#allocation3], 1
    %9 = vsyncpa %s8, 0
    %10 = vsyncpa [#allocation6], 0
    %11 = vsyncpa [#allocation4], 0
    %s12 = scalar_lea.sflag [#allocation4], 1
    %13 = vsyncpa %s12, 0
    loop: start=0, step=1, limit=4
    $region2: #{tpu_custom_call.1} parent=1 // loop_pre_header
      _
    $region3: #{tpu_custom_call.1} parent=1 // loop_header
      %s15 = sphi 0, %s19
      %p16 = scmp.ge.s32.totalorder %s15, 4
      %s25 = sphi 0, %s27
      %s28 = sphi 0, %s25
      %s29 = sphi 0, %s28
      %s45 = sphi 0, %s29
      %s49 = sphi 0, %s49
      %s51 = sphi 0, %s49
      %s52 = sphi 0, %s51
      %s66 = sphi 0, %s52
      %s72 = sphi 0, %s74
      %s75 = sphi 0, %s72
      %s76 = sphi 0, %s75
      %s92 = sphi 0, %s76
    $region4: #{tpu_custom_call.1} parent=1 // loop_header_branch
      %18 = sbr.rel (%p16) target = $region8
    $region5: #{tpu_custom_call.1} parent=1 // loop_body
      %s20 = ssub.s32 %s15, 1
      %s21 = ssub.s32 %s15, 2
      %s22 = sadd.s32 %s15, 1
      %s23 = ssub.s32 %s15, %s22
      %p24 = scmp.eq.s32.totalorder %s23, 0
      %s26 = sadd.s32 %s25, 1
      %s27 = scalar_select %p24, %s25, %s26
      %p30 = pneg %p24
      %p31 = scmp.eq.s32.totalorder %s15, 1
      %p32 = por %p30, %p31
      %p33 = scmp.ne.s32.totalorder %s25, %s28
      %p34 = scmp.eq.s32.totalorder %s15, 0
      %p35 = por %p33, %p34
      %p36 = scmp.ne.s32.totalorder %s25, %s28
      %p37 = scmp.eq.s32.totalorder %s20, 1
      %p38 = por %p36, %p37
      %p39 = scmp.ne.s32.totalorder %s28, %s29
      %p40 = scmp.eq.s32.totalorder %s20, 0
      %p41 = por %p39, %p40
      %p42 = scmp.ne.s32.totalorder %s28, %s29
      %p43 = scmp.eq.s32.totalorder %s21, 1
      %p44 = por %p42, %p43
      %p46 = scmp.ne.s32.totalorder %s29, %s45
      %p47 = scmp.eq.s32.totalorder %s21, 0
      %p48 = por %p46, %p47
      %s50 = sadd.s32 %s49, 1
      %p53 = scmp.eq.s32.totalorder %s15, 1
      %p54 = scmp.ne.s32.totalorder %s49, %s51
      %p55 = scmp.eq.s32.totalorder %s15, 0
      %p56 = por %p54, %p55
      %p57 = scmp.ne.s32.totalorder %s49, %s51
      %p58 = scmp.eq.s32.totalorder %s20, 1
      %p59 = por %p57, %p58
      %p60 = scmp.ne.s32.totalorder %s51, %s52
      %p61 = scmp.eq.s32.totalorder %s20, 0
      %p62 = por %p60, %p61
      %p63 = scmp.ne.s32.totalorder %s51, %s52
      %p64 = scmp.eq.s32.totalorder %s21, 1
      %p65 = por %p63, %p64
      %p67 = scmp.ne.s32.totalorder %s52, %s66
      %p68 = scmp.eq.s32.totalorder %s21, 0
      %p69 = por %p67, %p68
      %s70 = ssub.s32 %s15, %s22
      %p71 = scmp.eq.s32.totalorder %s70, 0
      %s73 = sadd.s32 %s72, 1
      %s74 = scalar_select %p71, %s72, %s73
      %p77 = pneg %p71
      %p78 = scmp.eq.s32.totalorder %s15, 1
      %p79 = por %p77, %p78
      %p80 = scmp.ne.s32.totalorder %s72, %s75
      %p81 = scmp.eq.s32.totalorder %s15, 0
      %p82 = por %p80, %p81
      %p83 = scmp.ne.s32.totalorder %s72, %s75
      %p84 = scmp.eq.s32.totalorder %s20, 1
      %p85 = por %p83, %p84
      %p86 = scmp.ne.s32.totalorder %s75, %s76
      %p87 = scmp.eq.s32.totalorder %s20, 0
      %p88 = por %p86, %p87
      %p89 = scmp.ne.s32.totalorder %s75, %s76
      %p90 = scmp.eq.s32.totalorder %s21, 1
      %p91 = por %p89, %p90
      %p93 = scmp.ne.s32.totalorder %s76, %s92
      %p94 = scmp.eq.s32.totalorder %s21, 0
      %p95 = por %p93, %p94
      %p96 = scmp.le.s32.totalorder 1, %s15
      %p97 = scmp.lt.s32.totalorder %s15, 3
      %p98 = pnand %p96, %p97
      %p99 = pneg %p98
      // Predicated region
      $region9: #{tpu_custom_call.1} parent=5 // pred_check
        _
      $region10: #{tpu_custom_call.1} parent=5 // pred_check_branch
        %101 = sbr.rel (%p98) target = $region12
      $region11: #{tpu_custom_call.1} parent=5 // pred_region
        %s102 = ssub.s32 %s15, 1
        // Predicated region
        $region13: #{tpu_custom_call.1} parent=11 // pred_check
          %p103 = pneg %p62
        $region14: #{tpu_custom_call.1} parent=11 // pred_check_branch
          %105 = sbr.rel (%p103) target = $region16
        $region15: #{tpu_custom_call.1} parent=11 // pred_region
          %s107 = ssub.s32 8192, 8192
          %108 = vsyncadd [#allocation6], %s107
          %s109 = sshll.u32 [#allocation5], 4
          %s110 = int_to_ptr.vmem [resolvable:$true] %s109
          %115 = dma.hbm_to_vmem [thread:$0]  %s1, 8192, %s110, [#allocation6], 128, 128, 8
        $region16: #{tpu_custom_call.1} parent=11 // pred_fallthru
          _
      $region12: #{tpu_custom_call.1} parent=5 // pred_fallthru
        _
      %p116 = scmp.lt.s32.totalorder %s15, 2
      // Predicated region
      $region17: #{tpu_custom_call.1} parent=5 // pred_check
        %p117 = pneg %p116
      $region18: #{tpu_custom_call.1} parent=5 // pred_check_branch
        %119 = sbr.rel (%p117) target = $region20
      $region19: #{tpu_custom_call.1} parent=5 // pred_region
        // Predicated region
        $region21: #{tpu_custom_call.1} parent=19 // pred_check
          %p120 = pneg %p35
        $region22: #{tpu_custom_call.1} parent=19 // pred_check_branch
          %122 = sbr.rel (%p120) target = $region24
        $region23: #{tpu_custom_call.1} parent=19 // pred_region
          %s123 = sand.u32 %s25, 1
          %s124 = scalar_lea.sflag [#allocation3], %s123
          %s125 = sand.u32 %s25, 1
          %s126 = smul.addr %s125, 512
          %s127 = scalar_lea.vmem [#allocation2], %s126
          %s128 = smul.u32 16, %s15
          %s130 = ssub.s32 8192, 8192
          %131 = vsyncadd %s124, %s130
          %s132 = smul.addr %s128, 4
          %s133 = smul.addr %s132, 128
          %s134 = scalar_lea.hbm %s0, %s133
          %s135 = sshll.u32 %s127, 4
          %s136 = int_to_ptr.vmem [resolvable:$true] %s135
          %141 = dma.hbm_to_vmem [thread:$0]  %s134, 8192, %s136, %s124, 512, 512, 32
        $region24: #{tpu_custom_call.1} parent=19 // pred_fallthru
          _
      $region20: #{tpu_custom_call.1} parent=5 // pred_fallthru
        _
      %p142 = scmp.le.s32.totalorder 1, %s15
      %p143 = scmp.lt.s32.totalorder %s15, 3
      %p144 = pnand %p142, %p143
      %p145 = pneg %p144
      // Predicated region
      $region25: #{tpu_custom_call.1} parent=5 // pred_check
        _
      $region26: #{tpu_custom_call.1} parent=5 // pred_check_branch
        %147 = sbr.rel (%p144) target = $region28
      $region27: #{tpu_custom_call.1} parent=5 // pred_region
        %s148 = ssub.s32 %s15, 1
        %s149 = sand.u32 %s28, 1
        %s150 = scalar_lea.sflag [#allocation3], %s149
        %s151 = sand.u32 %s28, 1
        %s152 = smul.addr %s151, 512
        %s153 = scalar_lea.vmem [#allocation2], %s152
        // Predicated region
        $region29: #{tpu_custom_call.1} parent=27 // pred_check
          %p154 = pneg %p41
        $region30: #{tpu_custom_call.1} parent=27 // pred_check_branch
          %156 = sbr.rel (%p154) target = $region32
        $region31: #{tpu_custom_call.1} parent=27 // pred_region
          %157 = dma.done %s150, 8192
        $region32: #{tpu_custom_call.1} parent=27 // pred_fallthru
          _
        // Predicated region
        $region33: #{tpu_custom_call.1} parent=27 // pred_check
          %p158 = pneg %p62
        $region34: #{tpu_custom_call.1} parent=27 // pred_check_branch
          %160 = sbr.rel (%p158) target = $region36
        $region35: #{tpu_custom_call.1} parent=27 // pred_region
          %161 = dma.done [#allocation6], 8192
        $region36: #{tpu_custom_call.1} parent=27 // pred_fallthru
          _
        %s162 = sand.u32 %s28, 1
        %s163 = scalar_lea.sflag [#allocation3], %s162
        %s164 = sand.u32 %s28, 1
        %s165 = smul.addr %s164, 512
        %s166 = scalar_lea.vmem [#allocation2], %s165
        %p167 = pneg %p41
        %p168 = pneg %p38
        %p169 = pneg %p62
        %p170 = pneg %p59
        %p171 = pneg %p88
        %p172 = pneg %p85
        %s173 = sand.u32 %s75, 1
        %s174 = scalar_lea.sflag [#allocation4], %s173
        %s175 = sand.u32 %s75, 1
        %s176 = smul.addr %s175, 128
        %s177 = scalar_lea.vmem [#allocation7], %s176
        %s178 = smul.u32 16, %s20
        %s179 = smul.u32 16, %s20
        %v180 = vld [vmem:[%s153] sm:$0xff]
        %v181 = vld [vmem:[%s153 + $0x8] sm:$0xff]
        %v182 = vld [vmem:[%s153 + $0x10] sm:$0xff]
        %v183 = vld [vmem:[%s153 + $0x18] sm:$0xff]
        %v184 = vld [vmem:[%s153 + $0x20] sm:$0xff]
        %v185 = vld [vmem:[%s153 + $0x28] sm:$0xff]
        %v186 = vld [vmem:[%s153 + $0x30] sm:$0xff]
        %v187 = vld [vmem:[%s153 + $0x38] sm:$0xff]
        %v188 = vld [vmem:[%s153 + $0x40] sm:$0xff]
        %v189 = vld [vmem:[%s153 + $0x48] sm:$0xff]
        %v190 = vld [vmem:[%s153 + $0x50] sm:$0xff]
        %v191 = vld [vmem:[%s153 + $0x58] sm:$0xff]
        %v192 = vld [vmem:[%s153 + $0x60] sm:$0xff]
        %v193 = vld [vmem:[%s153 + $0x68] sm:$0xff]
        %v194 = vld [vmem:[%s153 + $0x70] sm:$0xff]
        %v195 = vld [vmem:[%s153 + $0x78] sm:$0xff]
        %v196 = vld [vmem:[%s153 + $0x80] sm:$0xff]
        %v197 = vld [vmem:[%s153 + $0x88] sm:$0xff]
        %v198 = vld [vmem:[%s153 + $0x90] sm:$0xff]
        %v199 = vld [vmem:[%s153 + $0x98] sm:$0xff]
        %v200 = vld [vmem:[%s153 + $0xa0] sm:$0xff]
        %v201 = vld [vmem:[%s153 + $0xa8] sm:$0xff]
        %v202 = vld [vmem:[%s153 + $0xb0] sm:$0xff]
        %v203 = vld [vmem:[%s153 + $0xb8] sm:$0xff]
        %v204 = vld [vmem:[%s153 + $0xc0] sm:$0xff]
        %v205 = vld [vmem:[%s153 + $0xc8] sm:$0xff]
        %v206 = vld [vmem:[%s153 + $0xd0] sm:$0xff]
        %v207 = vld [vmem:[%s153 + $0xd8] sm:$0xff]
        %v208 = vld [vmem:[%s153 + $0xe0] sm:$0xff]
        %v209 = vld [vmem:[%s153 + $0xe8] sm:$0xff]
        %v210 = vld [vmem:[%s153 + $0xf0] sm:$0xff]
        %v211 = vld [vmem:[%s153 + $0xf8] sm:$0xff]
        %v212 = vld [vmem:[%s153 + $0x100] sm:$0xff]
        %v213 = vld [vmem:[%s153 + $0x108] sm:$0xff]
        %v214 = vld [vmem:[%s153 + $0x110] sm:$0xff]
        %v215 = vld [vmem:[%s153 + $0x118] sm:$0xff]
        %v216 = vld [vmem:[%s153 + $0x120] sm:$0xff]
        %v217 = vld [vmem:[%s153 + $0x128] sm:$0xff]
        %v218 = vld [vmem:[%s153 + $0x130] sm:$0xff]
        %v219 = vld [vmem:[%s153 + $0x138] sm:$0xff]
        %v220 = vld [vmem:[%s153 + $0x140] sm:$0xff]
        %v221 = vld [vmem:[%s153 + $0x148] sm:$0xff]
        %v222 = vld [vmem:[%s153 + $0x150] sm:$0xff]
        %v223 = vld [vmem:[%s153 + $0x158] sm:$0xff]
        %v224 = vld [vmem:[%s153 + $0x160] sm:$0xff]
        %v225 = vld [vmem:[%s153 + $0x168] sm:$0xff]
        %v226 = vld [vmem:[%s153 + $0x170] sm:$0xff]
        %v227 = vld [vmem:[%s153 + $0x178] sm:$0xff]
        %v228 = vld [vmem:[%s153 + $0x180] sm:$0xff]
        %v229 = vld [vmem:[%s153 + $0x188] sm:$0xff]
        %v230 = vld [vmem:[%s153 + $0x190] sm:$0xff]
        %v231 = vld [vmem:[%s153 + $0x198] sm:$0xff]
        %v232 = vld [vmem:[%s153 + $0x1a0] sm:$0xff]
        %v233 = vld [vmem:[%s153 + $0x1a8] sm:$0xff]
        %v234 = vld [vmem:[%s153 + $0x1b0] sm:$0xff]
        %v235 = vld [vmem:[%s153 + $0x1b8] sm:$0xff]
        %v236 = vld [vmem:[%s153 + $0x1c0] sm:$0xff]
        %v237 = vld [vmem:[%s153 + $0x1c8] sm:$0xff]
        %v238 = vld [vmem:[%s153 + $0x1d0] sm:$0xff]
        %v239 = vld [vmem:[%s153 + $0x1d8] sm:$0xff]
        %v240 = vld [vmem:[%s153 + $0x1e0] sm:$0xff]
        %v241 = vld [vmem:[%s153 + $0x1e8] sm:$0xff]
        %v242 = vld [vmem:[%s153 + $0x1f0] sm:$0xff]
        %v243 = vld [vmem:[%s153 + $0x1f8] sm:$0xff]
        %v244 = vld [vmem:[#allocation5] sm:$0xff]
        %v245 = vld [vmem:[#allocation5 + $0x8] sm:$0xff]
        %v246 = vld [vmem:[#allocation5 + $0x10] sm:$0xff]
        %v247 = vld [vmem:[#allocation5 + $0x18] sm:$0xff]
        %v248 = vld [vmem:[#allocation5 + $0x20] sm:$0xff]
        %v249 = vld [vmem:[#allocation5 + $0x28] sm:$0xff]
        %v250 = vld [vmem:[#allocation5 + $0x30] sm:$0xff]
        %v251 = vld [vmem:[#allocation5 + $0x38] sm:$0xff]
        %v252 = vld [vmem:[#allocation5 + $0x40] sm:$0xff]
        %v253 = vld [vmem:[#allocation5 + $0x48] sm:$0xff]
        %v254 = vld [vmem:[#allocation5 + $0x50] sm:$0xff]
        %v255 = vld [vmem:[#allocation5 + $0x58] sm:$0xff]
        %v256 = vld [vmem:[#allocation5 + $0x60] sm:$0xff]
        %v257 = vld [vmem:[#allocation5 + $0x68] sm:$0xff]
        %v258 = vld [vmem:[#allocation5 + $0x70] sm:$0xff]
        %v259 = vld [vmem:[#allocation5 + $0x78] sm:$0xff]
        %v260 = vld [vmem:[#allocation5 + $0x80] sm:$0xff]
        %v261 = vld [vmem:[#allocation5 + $0x88] sm:$0xff]
        %v262 = vld [vmem:[#allocation5 + $0x90] sm:$0xff]
        %v263 = vld [vmem:[#allocation5 + $0x98] sm:$0xff]
        %v264 = vld [vmem:[#allocation5 + $0xa0] sm:$0xff]
        %v265 = vld [vmem:[#allocation5 + $0xa8] sm:$0xff]
        %v266 = vld [vmem:[#allocation5 + $0xb0] sm:$0xff]
        %v267 = vld [vmem:[#allocation5 + $0xb8] sm:$0xff]
        %v268 = vld [vmem:[#allocation5 + $0xc0] sm:$0xff]
        %v269 = vld [vmem:[#allocation5 + $0xc8] sm:$0xff]
        %v270 = vld [vmem:[#allocation5 + $0xd0] sm:$0xff]
        %v271 = vld [vmem:[#allocation5 + $0xd8] sm:$0xff]
        %v272 = vld [vmem:[#allocation5 + $0xe0] sm:$0xff]
        %v273 = vld [vmem:[#allocation5 + $0xe8] sm:$0xff]
        %v274 = vld [vmem:[#allocation5 + $0xf0] sm:$0xff]
        %v275 = vld [vmem:[#allocation5 + $0xf8] sm:$0xff]
        %v276 = vld [vmem:[#allocation5 + $0x100] sm:$0xff]
        %v277 = vld [vmem:[#allocation5 + $0x108] sm:$0xff]
        %v278 = vld [vmem:[#allocation5 + $0x110] sm:$0xff]
        %v279 = vld [vmem:[#allocation5 + $0x118] sm:$0xff]
        %v280 = vld [vmem:[#allocation5 + $0x120] sm:$0xff]
        %v281 = vld [vmem:[#allocation5 + $0x128] sm:$0xff]
        %v282 = vld [vmem:[#allocation5 + $0x130] sm:$0xff]
        %v283 = vld [vmem:[#allocation5 + $0x138] sm:$0xff]
        %v284 = vld [vmem:[#allocation5 + $0x140] sm:$0xff]
        %v285 = vld [vmem:[#allocation5 + $0x148] sm:$0xff]
        %v286 = vld [vmem:[#allocation5 + $0x150] sm:$0xff]
        %v287 = vld [vmem:[#allocation5 + $0x158] sm:$0xff]
        %v288 = vld [vmem:[#allocation5 + $0x160] sm:$0xff]
        %v289 = vld [vmem:[#allocation5 + $0x168] sm:$0xff]
        %v290 = vld [vmem:[#allocation5 + $0x170] sm:$0xff]
        %v291 = vld [vmem:[#allocation5 + $0x178] sm:$0xff]
        %v292 = vld [vmem:[#allocation5 + $0x180] sm:$0xff]
        %v293 = vld [vmem:[#allocation5 + $0x188] sm:$0xff]
        %v294 = vld [vmem:[#allocation5 + $0x190] sm:$0xff]
        %v295 = vld [vmem:[#allocation5 + $0x198] sm:$0xff]
        %v296 = vld [vmem:[#allocation5 + $0x1a0] sm:$0xff]
        %v297 = vld [vmem:[#allocation5 + $0x1a8] sm:$0xff]
        %v298 = vld [vmem:[#allocation5 + $0x1b0] sm:$0xff]
        %v299 = vld [vmem:[#allocation5 + $0x1b8] sm:$0xff]
        %v300 = vld [vmem:[#allocation5 + $0x1c0] sm:$0xff]
        %v301 = vld [vmem:[#allocation5 + $0x1c8] sm:$0xff]
        %v302 = vld [vmem:[#allocation5 + $0x1d0] sm:$0xff]
        %v303 = vld [vmem:[#allocation5 + $0x1d8] sm:$0xff]
        %v304 = vld [vmem:[#allocation5 + $0x1e0] sm:$0xff]
        %v305 = vld [vmem:[#allocation5 + $0x1e8] sm:$0xff]
        %v306 = vld [vmem:[#allocation5 + $0x1f0] sm:$0xff]
        %v307 = vld [vmem:[#allocation5 + $0x1f8] sm:$0xff]
        %v308 = vmax.f32 %v244, 0.0
        %v309 = vmax.f32 %v245, 0.0
        %v310 = vmax.f32 %v246, 0.0
        %v311 = vmax.f32 %v247, 0.0
        %v312 = vmax.f32 %v248, 0.0
        %v313 = vmax.f32 %v249, 0.0
        %v314 = vmax.f32 %v250, 0.0
        %v315 = vmax.f32 %v251, 0.0
        %v316 = vmax.f32 %v252, 0.0
        %v317 = vmax.f32 %v253, 0.0
        %v318 = vmax.f32 %v254, 0.0
        %v319 = vmax.f32 %v255, 0.0
        %v320 = vmax.f32 %v256, 0.0
        %v321 = vmax.f32 %v257, 0.0
        %v322 = vmax.f32 %v258, 0.0
        %v323 = vmax.f32 %v259, 0.0
        %v324 = vmax.f32 %v260, 0.0
        %v325 = vmax.f32 %v261, 0.0
        %v326 = vmax.f32 %v262, 0.0
        %v327 = vmax.f32 %v263, 0.0
        %v328 = vmax.f32 %v264, 0.0
        %v329 = vmax.f32 %v265, 0.0
        %v330 = vmax.f32 %v266, 0.0
        %v331 = vmax.f32 %v267, 0.0
        %v332 = vmax.f32 %v268, 0.0
        %v333 = vmax.f32 %v269, 0.0
        %v334 = vmax.f32 %v270, 0.0
        %v335 = vmax.f32 %v271, 0.0
        %v336 = vmax.f32 %v272, 0.0
        %v337 = vmax.f32 %v273, 0.0
        %v338 = vmax.f32 %v274, 0.0
        %v339 = vmax.f32 %v275, 0.0
        %v340 = vmax.f32 %v276, 0.0
        %v341 = vmax.f32 %v277, 0.0
        %v342 = vmax.f32 %v278, 0.0
        %v343 = vmax.f32 %v279, 0.0
        %v344 = vmax.f32 %v280, 0.0
        %v345 = vmax.f32 %v281, 0.0
        %v346 = vmax.f32 %v282, 0.0
        %v347 = vmax.f32 %v283, 0.0
        %v348 = vmax.f32 %v284, 0.0
        %v349 = vmax.f32 %v285, 0.0
        %v350 = vmax.f32 %v286, 0.0
        %v351 = vmax.f32 %v287, 0.0
        %v352 = vmax.f32 %v288, 0.0
        %v353 = vmax.f32 %v289, 0.0
        %v354 = vmax.f32 %v290, 0.0
        %v355 = vmax.f32 %v291, 0.0
        %v356 = vmax.f32 %v292, 0.0
        %v357 = vmax.f32 %v293, 0.0
        %v358 = vmax.f32 %v294, 0.0
        %v359 = vmax.f32 %v295, 0.0
        %v360 = vmax.f32 %v296, 0.0
        %v361 = vmax.f32 %v297, 0.0
        %v362 = vmax.f32 %v298, 0.0
        %v363 = vmax.f32 %v299, 0.0
        %v364 = vmax.f32 %v300, 0.0
        %v365 = vmax.f32 %v301, 0.0
        %v366 = vmax.f32 %v302, 0.0
        %v367 = vmax.f32 %v303, 0.0
        %v368 = vmax.f32 %v304, 0.0
        %v369 = vmax.f32 %v305, 0.0
        %v370 = vmax.f32 %v306, 0.0
        %v371 = vmax.f32 %v307, 0.0
        %372 = vmatprep.subr.mxu0 0.0
        %373 = vmatpush1.msra.mxu0 %v308
        %374 = vmatprep.subr.mxu0 0.0
        %375 = vmatpush1.msra.mxu0 %v309
        %376 = vmatprep.subr.mxu0 0.0
        %377 = vmatpush1.msra.mxu0 %v310
        %378 = vmatprep.subr.mxu0 0.0
        %379 = vmatpush1.msra.mxu0 %v311
        %380 = vmatprep.subr.mxu0 0.0
        %381 = vmatpush1.msra.mxu0 %v312
        %382 = vmatprep.subr.mxu0 0.0
        %383 = vmatpush1.msra.mxu0 %v313
        %384 = vmatprep.subr.mxu0 0.0
        %385 = vmatpush1.msra.mxu0 %v314
        %386 = vmatprep.subr.mxu0 0.0
        %387 = vmatpush1.msra.mxu0 %v315
        %388 = vmatprep.subr.mxu0 0.0
        %389 = vmatpush1.msra.mxu0 %v316
        %390 = vmatprep.subr.mxu0 0.0
        %391 = vmatpush1.msra.mxu0 %v317
        %392 = vmatprep.subr.mxu0 0.0
        %393 = vmatpush1.msra.mxu0 %v318
        %394 = vmatprep.subr.mxu0 0.0
        %395 = vmatpush1.msra.mxu0 %v319
        %396 = vmatprep.subr.mxu0 0.0
        %397 = vmatpush1.msra.mxu0 %v320
        %398 = vmatprep.subr.mxu0 0.0
        %399 = vmatpush1.msra.mxu0 %v321
        %400 = vmatprep.subr.mxu0 0.0
        %401 = vmatpush1.msra.mxu0 %v322
        %402 = vmatprep.subr.mxu0 0.0
        %403 = vmatpush1.msra.mxu0 %v323
        %404 = vmatprep.subr.mxu0 0.0
        %405 = vmatpush1.msra.mxu0 %v324
        %406 = vmatprep.subr.mxu0 0.0
        %407 = vmatpush1.msra.mxu0 %v325
        %408 = vmatprep.subr.mxu0 0.0
        %409 = vmatpush1.msra.mxu0 %v326
        %410 = vmatprep.subr.mxu0 0.0
        %411 = vmatpush1.msra.mxu0 %v327
        %412 = vmatprep.subr.mxu0 0.0
        %413 = vmatpush1.msra.mxu0 %v328
        %414 = vmatprep.subr.mxu0 0.0
        %415 = vmatpush1.msra.mxu0 %v329
        %416 = vmatprep.subr.mxu0 0.0
        %417 = vmatpush1.msra.mxu0 %v330
        %418 = vmatprep.subr.mxu0 0.0
        %419 = vmatpush1.msra.mxu0 %v331
        %420 = vmatprep.subr.mxu0 0.0
        %421 = vmatpush1.msra.mxu0 %v332
        %422 = vmatprep.subr.mxu0 0.0
        %423 = vmatpush1.msra.mxu0 %v333
        %424 = vmatprep.subr.mxu0 0.0
        %425 = vmatpush1.msra.mxu0 %v334
        %426 = vmatprep.subr.mxu0 0.0
        %427 = vmatpush1.msra.mxu0 %v335
        %428 = vmatprep.subr.mxu0 0.0
        %429 = vmatpush1.msra.mxu0 %v336
        %430 = vmatprep.subr.mxu0 0.0
        %431 = vmatpush1.msra.mxu0 %v337
        %432 = vmatprep.subr.mxu0 0.0
        %433 = vmatpush1.msra.mxu0 %v338
        %434 = vmatprep.subr.mxu0 0.0
        %435 = vmatpush1.msra.mxu0 %v339
        %436 = vmatprep.mubr.f32.mxu0 %v181
        %437 = vmatmul.mubr.f32.gmra.mrb[0].mxu0 %v180
        %v438 = vpop.f32.mrb[0].mxu0
        %v439 = vadd.f32 0.0, %v438
        %v440 = vpop.f32.mrb[0].mxu0
        %441 = vmatprep.mubr.f32.mxu0 %v185
        %442 = vmatmul.mubr.f32.gmra.mrb[0].mxu0 %v184
        %v443 = vpop.f32.mrb[0].mxu0
        %v444 = vadd.f32 0.0, %v443
        %v445 = vpop.f32.mrb[0].mxu0
        %446 = vmatprep.mubr.f32.mxu0 %v189
        %447 = vmatmul.mubr.f32.gmra.mrb[0].mxu0 %v188
        %v448 = vpop.f32.mrb[0].mxu0
        %v449 = vadd.f32 0.0, %v448
        %v450 = vpop.f32.mrb[0].mxu0
        %451 = vmatprep.mubr.f32.mxu0 %v193
        %452 = vmatmul.mubr.f32.gmra.mrb[0].mxu0 %v192
        %v453 = vpop.f32.mrb[0].mxu0
        %v454 = vadd.f32 0.0, %v453
        %v455 = vpop.f32.mrb[0].mxu0
        %456 = vmatprep.mubr.f32.mxu0 %v197
        %457 = vmatmul.mubr.f32.gmra.mrb[0].mxu0 %v196
        %v458 = vpop.f32.mrb[0].mxu0
        %v459 = vadd.f32 0.0, %v458
        %v460 = vpop.f32.mrb[0].mxu0
        %461 = vmatprep.mubr.f32.mxu0 %v201
        %462 = vmatmul.mubr.f32.gmra.mrb[0].mxu0 %v200
        %v463 = vpop.f32.mrb[0].mxu0
        %v464 = vadd.f32 0.0, %v463
        %v465 = vpop.f32.mrb[0].mxu0
        %466 = vmatprep.mubr.f32.mxu0 %v205
        %467 = vmatmul.mubr.f32.gmra.mrb[0].mxu0 %v204
        %v468 = vpop.f32.mrb[0].mxu0
        %v469 = vadd.f32 0.0, %v468
        %v470 = vpop.f32.mrb[0].mxu0
        %471 = vmatprep.mubr.f32.mxu0 %v209
        %472 = vmatmul.mubr.f32.gmra.mrb[0].mxu0 %v208
        %v473 = vpop.f32.mrb[0].mxu0
        %v474 = vadd.f32 0.0, %v473
        %v475 = vpop.f32.mrb[0].mxu0
        %476 = vmatprep.mubr.f32.mxu0 %v213
        %477 = vmatmul.mubr.f32.gmra.mrb[0].mxu0 %v212
        %v478 = vpop.f32.mrb[0].mxu0
        %v479 = vadd.f32 0.0, %v478
        %v480 = vpop.f32.mrb[0].mxu0
        %481 = vmatprep.mubr.f32.mxu0 %v217
        %482 = vmatmul.mubr.f32.gmra.mrb[0].mxu0 %v216
        %v483 = vpop.f32.mrb[0].mxu0
        %v484 = vadd.f32 0.0, %v483
        %v485 = vpop.f32.mrb[0].mxu0
        %486 = vmatprep.mubr.f32.mxu0 %v221
        %487 = vmatmul.mubr.f32.gmra.mrb[0].mxu0 %v220
        %v488 = vpop.f32.mrb[0].mxu0
        %v489 = vadd.f32 0.0, %v488
        %v490 = vpop.f32.mrb[0].mxu0
        %491 = vmatprep.mubr.f32.mxu0 %v225
        %492 = vmatmul.mubr.f32.gmra.mrb[0].mxu0 %v224
        %v493 = vpop.f32.mrb[0].mxu0
        %v494 = vadd.f32 0.0, %v493
        %v495 = vpop.f32.mrb[0].mxu0
        %496 = vmatprep.mubr.f32.mxu0 %v229
        %497 = vmatmul.mubr.f32.gmra.mrb[0].mxu0 %v228
        %v498 = vpop.f32.mrb[0].mxu0
        %v499 = vadd.f32 0.0, %v498
        %v500 = vpop.f32.mrb[0].mxu0
        %501 = vmatprep.mubr.f32.mxu0 %v233
        %502 = vmatmul.mubr.f32.gmra.mrb[0].mxu0 %v232
        %v503 = vpop.f32.mrb[0].mxu0
        %v504 = vadd.f32 0.0, %v503
        %v505 = vpop.f32.mrb[0].mxu0
        %506 = vmatprep.mubr.f32.mxu0 %v237
        %507 = vmatmul.mubr.f32.gmra.mrb[0].mxu0 %v236
        %v508 = vpop.f32.mrb[0].mxu0
        %v509 = vadd.f32 0.0, %v508
        %v510 = vpop.f32.mrb[0].mxu0
        %511 = vmatprep.mubr.f32.mxu0 %v241
        %512 = vmatmul.mubr.f32.gmra.mrb[0].mxu0 %v240
        %v513 = vpop.f32.mrb[0].mxu0
        %v514 = vadd.f32 0.0, %v513
        %v515 = vpop.f32.mrb[0].mxu0
        %516 = vdwg.mxu0
        %517 = vmatprep.subr.mxu0 0.0
        %518 = vmatpush1.msra.mxu0 %v340
        %519 = vmatprep.subr.mxu0 0.0
        %520 = vmatpush1.msra.mxu0 %v341
        %521 = vmatprep.subr.mxu0 0.0
        %522 = vmatpush1.msra.mxu0 %v342
        %523 = vmatprep.subr.mxu0 0.0
        %524 = vmatpush1.msra.mxu0 %v343
        %525 = vmatprep.subr.mxu0 0.0
        %526 = vmatpush1.msra.mxu0 %v344
        %527 = vmatprep.subr.mxu0 0.0
        %528 = vmatpush1.msra.mxu0 %v345
        %529 = vmatprep.subr.mxu0 0.0
        %530 = vmatpush1.msra.mxu0 %v346
        %531 = vmatprep.subr.mxu0 0.0
        %532 = vmatpush1.msra.mxu0 %v347
        %533 = vmatprep.subr.mxu0 0.0
        %534 = vmatpush1.msra.mxu0 %v348
        %535 = vmatprep.subr.mxu0 0.0
        %536 = vmatpush1.msra.mxu0 %v349
        %537 = vmatprep.subr.mxu0 0.0
        %538 = vmatpush1.msra.mxu0 %v350
        %539 = vmatprep.subr.mxu0 0.0
        %540 = vmatpush1.msra.mxu0 %v351
        %541 = vmatprep.subr.mxu0 0.0
        %542 = vmatpush1.msra.mxu0 %v352
        %543 = vmatprep.subr.mxu0 0.0
        %544 = vmatpush1.msra.mxu0 %v353
        %545 = vmatprep.subr.mxu0 0.0
        %546 = vmatpush1.msra.mxu0 %v354
        %547 = vmatprep.subr.mxu0 0.0
        %548 = vmatpush1.msra.mxu0 %v355
        %549 = vmatprep.subr.mxu0 0.0
        %550 = vmatpush1.msra.mxu0 %v356
        %551 = vmatprep.subr.mxu0 0.0
        %552 = vmatpush1.msra.mxu0 %v357
        %553 = vmatprep.subr.mxu0 0.0
        %554 = vmatpush1.msra.mxu0 %v358
        %555 = vmatprep.subr.mxu0 0.0
        %556 = vmatpush1.msra.mxu0 %v359
        %557 = vmatprep.subr.mxu0 0.0
        %558 = vmatpush1.msra.mxu0 %v360
        %559 = vmatprep.subr.mxu0 0.0
        %560 = vmatpush1.msra.mxu0 %v361
        %561 = vmatprep.subr.mxu0 0.0
        %562 = vmatpush1.msra.mxu0 %v362
        %563 = vmatprep.subr.mxu0 0.0
        %564 = vmatpush1.msra.mxu0 %v363
        %565 = vmatprep.subr.mxu0 0.0
        %566 = vmatpush1.msra.mxu0 %v364
        %567 = vmatprep.subr.mxu0 0.0
        %568 = vmatpush1.msra.mxu0 %v365
        %569 = vmatprep.subr.mxu0 0.0
        %570 = vmatpush1.msra.mxu0 %v366
        %571 = vmatprep.subr.mxu0 0.0
        %572 = vmatpush1.msra.mxu0 %v367
        %573 = vmatprep.subr.mxu0 0.0
        %574 = vmatpush1.msra.mxu0 %v368
        %575 = vmatprep.subr.mxu0 0.0
        %576 = vmatpush1.msra.mxu0 %v369
        %577 = vmatprep.subr.mxu0 0.0
        %578 = vmatpush1.msra.mxu0 %v370
        %579 = vmatprep.subr.mxu0 0.0
        %580 = vmatpush1.msra.mxu0 %v371
        %581 = vmatprep.mubr.f32.mxu0 %v183
        %582 = vmatmul.mubr.f32.gmra.mrb[0].mxu0 %v182
        %v583 = vpop.f32.mrb[0].mxu0
        %v584 = vadd.f32 %v439, %v583
        %v585 = vpop.f32.mrb[0].mxu0
        %586 = vmatprep.mubr.f32.mxu0 %v187
        %587 = vmatmul.mubr.f32.gmra.mrb[0].mxu0 %v186
        %v588 = vpop.f32.mrb[0].mxu0
        %v589 = vadd.f32 %v444, %v588
        %v590 = vpop.f32.mrb[0].mxu0
        %591 = vmatprep.mubr.f32.mxu0 %v191
        %592 = vmatmul.mubr.f32.gmra.mrb[0].mxu0 %v190
        %v593 = vpop.f32.mrb[0].mxu0
        %v594 = vadd.f32 %v449, %v593
        %v595 = vpop.f32.mrb[0].mxu0
        %596 = vmatprep.mubr.f32.mxu0 %v195
        %597 = vmatmul.mubr.f32.gmra.mrb[0].mxu0 %v194
        %v598 = vpop.f32.mrb[0].mxu0
        %v599 = vadd.f32 %v454, %v598
        %v600 = vpop.f32.mrb[0].mxu0
        %601 = vmatprep.mubr.f32.mxu0 %v199
        %602 = vmatmul.mubr.f32.gmra.mrb[0].mxu0 %v198
        %v603 = vpop.f32.mrb[0].mxu0
        %v604 = vadd.f32 %v459, %v603
        %v605 = vpop.f32.mrb[0].mxu0
        %606 = vmatprep.mubr.f32.mxu0 %v203
        %607 = vmatmul.mubr.f32.gmra.mrb[0].mxu0 %v202
        %v608 = vpop.f32.mrb[0].mxu0
        %v609 = vadd.f32 %v464, %v608
        %v610 = vpop.f32.mrb[0].mxu0
        %611 = vmatprep.mubr.f32.mxu0 %v207
        %612 = vmatmul.mubr.f32.gmra.mrb[0].mxu0 %v206
        %v613 = vpop.f32.mrb[0].mxu0
        %v614 = vadd.f32 %v469, %v613
        %v615 = vpop.f32.mrb[0].mxu0
        %616 = vmatprep.mubr.f32.mxu0 %v211
        %617 = vmatmul.mubr.f32.gmra.mrb[0].mxu0 %v210
        %v618 = vpop.f32.mrb[0].mxu0
        %v619 = vadd.f32 %v474, %v618
        %v620 = vpop.f32.mrb[0].mxu0
        %621 = vmatprep.mubr.f32.mxu0 %v215
        %622 = vmatmul.mubr.f32.gmra.mrb[0].mxu0 %v214
        %v623 = vpop.f32.mrb[0].mxu0
        %v624 = vadd.f32 %v479, %v623
        %v625 = vpop.f32.mrb[0].mxu0
        %626 = vmatprep.mubr.f32.mxu0 %v219
        %627 = vmatmul.mubr.f32.gmra.mrb[0].mxu0 %v218
        %v628 = vpop.f32.mrb[0].mxu0
        %v629 = vadd.f32 %v484, %v628
        %v630 = vpop.f32.mrb[0].mxu0
        %631 = vmatprep.mubr.f32.mxu0 %v223
        %632 = vmatmul.mubr.f32.gmra.mrb[0].mxu0 %v222
        %v633 = vpop.f32.mrb[0].mxu0
        %v634 = vadd.f32 %v489, %v633
        %v635 = vpop.f32.mrb[0].mxu0
        %636 = vmatprep.mubr.f32.mxu0 %v227
        %637 = vmatmul.mubr.f32.gmra.mrb[0].mxu0 %v226
        %v638 = vpop.f32.mrb[0].mxu0
        %v639 = vadd.f32 %v494, %v638
        %v640 = vpop.f32.mrb[0].mxu0
        %641 = vmatprep.mubr.f32.mxu0 %v231
        %642 = vmatmul.mubr.f32.gmra.mrb[0].mxu0 %v230
        %v643 = vpop.f32.mrb[0].mxu0
        %v644 = vadd.f32 %v499, %v643
        %v645 = vpop.f32.mrb[0].mxu0
        %646 = vmatprep.mubr.f32.mxu0 %v235
        %647 = vmatmul.mubr.f32.gmra.mrb[0].mxu0 %v234
        %v648 = vpop.f32.mrb[0].mxu0
        %v649 = vadd.f32 %v504, %v648
        %v650 = vpop.f32.mrb[0].mxu0
        %651 = vmatprep.mubr.f32.mxu0 %v239
        %652 = vmatmul.mubr.f32.gmra.mrb[0].mxu0 %v238
        %v653 = vpop.f32.mrb[0].mxu0
        %v654 = vadd.f32 %v509, %v653
        %v655 = vpop.f32.mrb[0].mxu0
        %656 = vmatprep.mubr.f32.mxu0 %v243
        %657 = vmatmul.mubr.f32.gmra.mrb[0].mxu0 %v242
        %v658 = vpop.f32.mrb[0].mxu0
        %v659 = vadd.f32 %v514, %v658
        %v660 = vpop.f32.mrb[0].mxu0
        %661 = vdwg.mxu0
        %662 = vst [vmem:[%s177] sm:$0xff] %v584
        %663 = vst [vmem:[%s177 + $0x8] sm:$0xff] %v589
        %664 = vst [vmem:[%s177 + $0x10] sm:$0xff] %v594
        %665 = vst [vmem:[%s177 + $0x18] sm:$0xff] %v599
        %666 = vst [vmem:[%s177 + $0x20] sm:$0xff] %v604
        %667 = vst [vmem:[%s177 + $0x28] sm:$0xff] %v609
        %668 = vst [vmem:[%s177 + $0x30] sm:$0xff] %v614
        %669 = vst [vmem:[%s177 + $0x38] sm:$0xff] %v619
        %670 = vst [vmem:[%s177 + $0x40] sm:$0xff] %v624
        %671 = vst [vmem:[%s177 + $0x48] sm:$0xff] %v629
        %672 = vst [vmem:[%s177 + $0x50] sm:$0xff] %v634
        %673 = vst [vmem:[%s177 + $0x58] sm:$0xff] %v639
        %674 = vst [vmem:[%s177 + $0x60] sm:$0xff] %v644
        %675 = vst [vmem:[%s177 + $0x68] sm:$0xff] %v649
        %676 = vst [vmem:[%s177 + $0x70] sm:$0xff] %v654
        %677 = vst [vmem:[%s177 + $0x78] sm:$0xff] %v659
        %s678 = sand.u32 %s75, 1
        %s679 = scalar_lea.sflag [#allocation4], %s678
        %s680 = sand.u32 %s75, 1
        %s681 = smul.addr %s680, 128
        %s682 = scalar_lea.vmem [#allocation7], %s681
        // Predicated region
        $region37: #{tpu_custom_call.1} parent=27 // pred_check
          %p683 = pneg %p85
        $region38: #{tpu_custom_call.1} parent=27 // pred_check_branch
          %685 = sbr.rel (%p683) target = $region40
        $region39: #{tpu_custom_call.1} parent=27 // pred_region
          %s686 = smul.u32 16, %s20
          %s688 = ssub.s32 2048, 2048
          %689 = vsyncadd %s679, %s688
          %s690 = smul.addr %s686, 128
          %s691 = scalar_lea.hbm %s2, %s690
          %s692 = sshll.u32 %s682, 4
          %s693 = int_to_ptr.vmem [resolvable:$true] %s692
          %698 = dma.vmem_to_hbm [thread:$0]  %s693, 2048, %s691, %s679, 128, 128, 8
        $region40: #{tpu_custom_call.1} parent=27 // pred_fallthru
          _
      $region28: #{tpu_custom_call.1} parent=5 // pred_fallthru
        _
      %p699 = scmp.le.s32.totalorder 2, %s15
      // Predicated region
      $region41: #{tpu_custom_call.1} parent=5 // pred_check
        %p700 = pneg %p699
      $region42: #{tpu_custom_call.1} parent=5 // pred_check_branch
        %702 = sbr.rel (%p700) target = $region44
      $region43: #{tpu_custom_call.1} parent=5 // pred_region
        %s703 = ssub.s32 %s15, 2
        // Predicated region
        $region45: #{tpu_custom_call.1} parent=43 // pred_check
          %p704 = pneg %p91
        $region46: #{tpu_custom_call.1} parent=43 // pred_check_branch
          %706 = sbr.rel (%p704) target = $region48
        $region47: #{tpu_custom_call.1} parent=43 // pred_region
          %s707 = sand.u32 %s76, 1
          %s708 = scalar_lea.sflag [#allocation4], %s707
          %s709 = sand.u32 %s76, 1
          %s710 = smul.addr %s709, 128
          %s711 = scalar_lea.vmem [#allocation7], %s710
          %712 = dma.done %s708, 2048
        $region48: #{tpu_custom_call.1} parent=43 // pred_fallthru
          _
      $region44: #{tpu_custom_call.1} parent=5 // pred_fallthru
        _
    $region6: #{tpu_custom_call.1} parent=1 // loop_footer
      %s19 = sadd.s32 1, %s15
    $region7: #{tpu_custom_call.1} parent=1 // loop_footer_branch
      %14 = sbr.rel target = $region3
    $region8: #{tpu_custom_call.1} parent=1 // loop_exit
      _
    %713 = vsyncpa [#allocation3], 1
    %s714 = scalar_lea.sflag [#allocation3], 1
    %715 = vsyncpa %s714, 1
    %716 = vsyncpa [#allocation6], 1
    %717 = vsyncpa [#allocation4], 1
    %s718 = scalar_lea.sflag [#allocation4], 1
    %719 = vsyncpa %s718, 1

</llo_original>
